<compile_context>
chip_gen: v7x
topology: tpu7x:2x2x1
jax: 0.10.0
libtpu: 0.0.40
codegen_flags: <defaults>
</compile_context>

<pallas_src>
import functools

import jax
import jax.numpy as jnp
from jax import lax
from jax.experimental import pallas as pl
from jax.experimental.pallas import tpu as pltpu


def _round_up(x, m):
    return ((x + m - 1) // m) * m


# ---------------------------------------------------------------------------
# Kernel A: fc1  ->  zh = Z @ W.T + b   (bf16 output for the bf16 MXU gram)
# ---------------------------------------------------------------------------
def _fc1_kernel(z_ref, w_ref, b_ref, zh_ref):
    # z_ref : (TM, D_PAD) bf16     w_ref : (D_PAD, H_PAD) bf16 (= fc1.weight.T)
    # b_ref : (1, H_PAD)  f32      zh_ref: (TM, H_PAD)  bf16
    acc = jnp.dot(z_ref[...], w_ref[...], preferred_element_type=jnp.float32)
    zh_ref[...] = (acc + b_ref[...]).astype(zh_ref.dtype)


def _fc1_call(Zg, W_t, b_pad, tile, B_N, D_PAD, H_PAD, G):
    Tm = pl.cdiv(B_N, tile)
    return pl.pallas_call(
        _fc1_kernel,
        out_shape=jax.ShapeDtypeStruct((G, B_N, H_PAD), jnp.bfloat16),
        grid=(G, Tm),
        in_specs=[
            pl.BlockSpec((None, tile, D_PAD), lambda g, i: (g, i, 0)),
            pl.BlockSpec((D_PAD, H_PAD), lambda g, i: (0, 0)),
            pl.BlockSpec((1, H_PAD), lambda g, i: (0, 0)),
        ],
        out_specs=pl.BlockSpec((None, tile, H_PAD), lambda g, i: (g, i, 0)),
        compiler_params=pltpu.CompilerParams(
            dimension_semantics=("parallel", "parallel")),
    )(Zg, W_t, b_pad)


# ---------------------------------------------------------------------------
# Kernel B: adjacency tile = sigmoid(zh_rows @ zh_cols.T)
# ---------------------------------------------------------------------------
def _gram_sigmoid_kernel(sizes_ref, zr_ref, zc_ref, adj_ref):
    g = pl.program_id(0)
    i = pl.program_id(1)
    j = pl.program_id(2)
    tm, tn = adj_ref.shape
    n_g = sizes_ref[g]

    # Tiles entirely inside the padded region skip compute; their (stale)
    # writeback is sliced off on the host, so content does not matter.
    @pl.when((i * tm < n_g) & (j * tn < n_g))
    def _():
        # zh @ zh.T without an explicit transpose: contract hidden dim of both.
        gram = lax.dot_general(
            zr_ref[...], zc_ref[...],
            dimension_numbers=(((1,), (1,)), ((), ())),
            preferred_element_type=jnp.float32,
        )
        # sigmoid(x) == 0.5*tanh(0.5*x)+0.5 : single EUP op, no divide.
        adj_ref[...] = (0.5 * jnp.tanh(0.5 * gram) + 0.5).astype(adj_ref.dtype)


def _gram_call(zh, sizes, tile, B_N, H_PAD, G):
    T = pl.cdiv(B_N, tile)
    # f32 output tile double-buffered + two bf16 zh streams double-buffered
    # + margin for Mosaic internal scratch; capped below v7x's 64 MiB physical.
    vmem_limit = int(min(2 * tile * tile * 4 + 4 * tile * H_PAD * 2 + (8 << 20),
                         64 << 20))
    return pl.pallas_call(
        _gram_sigmoid_kernel,
        out_shape=jax.ShapeDtypeStruct((G, B_N, B_N), jnp.float32),
        grid_spec=pltpu.PrefetchScalarGridSpec(
            num_scalar_prefetch=1,
            grid=(G, T, T),
            in_specs=[
                pl.BlockSpec((None, tile, H_PAD), lambda g, i, j, sz: (g, i, 0)),
                pl.BlockSpec((None, tile, H_PAD), lambda g, i, j, sz: (g, j, 0)),
            ],
            out_specs=pl.BlockSpec((None, tile, tile),
                                   lambda g, i, j, sz: (g, i, j)),
        ),
        compiler_params=pltpu.CompilerParams(
            dimension_semantics=("parallel", "parallel", "arbitrary"),
            vmem_limit_bytes=vmem_limit),
    )(sizes, zh, zh)


# ---------------------------------------------------------------------------
# Whole forward (pack -> fc1 -> gram/sigmoid -> unpack), jitted with static
# node_slice so packing, both pallas_calls and the unpack fuse into one
# XLA program (no per-graph host dispatches).
# ---------------------------------------------------------------------------
@functools.partial(jax.jit, static_argnames=("node_slice",))
def _forward_impl(Z, W, b, *, node_slice):
    G = len(node_slice) - 1
    sizes = tuple(node_slice[i + 1] - node_slice[i] for i in range(G))
    d_in = Z.shape[1]
    hidden = W.shape[0]

    D_PAD = _round_up(d_in, 128)
    H_PAD = _round_up(hidden, 128)
    B_N = _round_up(max(sizes), 128)   # lane-dense node bucket, minimal padding
    tile = min(B_N, 1024)              # big output tile; ragged last block OK

    # Zero-padded bf16 MXU operands: padded W rows/cols are zero, so padded
    # feature / hidden dims contribute nothing to either matmul.
    W_t = jnp.zeros((D_PAD, H_PAD), jnp.bfloat16)
    W_t = W_t.at[:d_in, :hidden].set(W.T.astype(jnp.bfloat16))
    b_pad = jnp.zeros((1, H_PAD), jnp.float32)
    b_pad = b_pad.at[0, :hidden].set(b.astype(jnp.float32))

    Z_bf = Z.astype(jnp.bfloat16)
    Zg = jnp.zeros((G, B_N, D_PAD), jnp.bfloat16)
    for i in range(G):                 # traced once; fuses to G update-slices
        s, e = node_slice[i], node_slice[i + 1]
        Zg = Zg.at[i, : e - s, :d_in].set(Z_bf[s:e])

    zh = _fc1_call(Zg, W_t, b_pad, tile, B_N, D_PAD, H_PAD, G)
    sizes_arr = jnp.asarray(sizes, dtype=jnp.int32)
    adj_pad = _gram_call(zh, sizes_arr, tile, B_N, H_PAD, G)

    # Ragged per-graph outputs (padding sliced off), like the PyTorch module.
    return tuple(adj_pad[i, : sizes[i], : sizes[i]] for i in range(G))


def inner_product_decoder_forward(Z, batch, _slice_dict, W, b):
    """Mirrors InnerProductDecoder.forward.

    Z: [N, input_dim] float32
    batch: [N] int32 graph-id per node (kept for signature parity only)
    _slice_dict: {'x': node_slice} with node_slice a list of int boundaries
    W: fc1.weight, shape [hidden_dim, input_dim]
    b: fc1.bias,   shape [hidden_dim]
    Returns: list of [n_i, n_i] float32 adjacency matrices, one per graph.
    """
    node_slice = tuple(int(v) for v in _slice_dict['x'])
    adj_batch = list(_forward_impl(Z, W, b, node_slice=node_slice))
    assert sum(a.shape[0] for a in adj_batch) == Z.shape[0]
    return adj_batch


if __name__ == "__main__":
    key = jax.random.PRNGKey(0)
    input_dim, hidden_dim = 8, 32   # dropout ctor arg of the module is unused in forward
    graph_sizes = [5, 7, 4]
    N = sum(graph_sizes)

    k_z, k_w, k_b = jax.random.split(key, 3)
    Z = jax.random.normal(k_z, (N, input_dim), dtype=jnp.float32)

    # Deterministic fc1 init (PyTorch-style uniform(-1/sqrt(fan_in), 1/sqrt(fan_in)))
    bound = 1.0 / (input_dim ** 0.5)
    W = jax.random.uniform(k_w, (hidden_dim, input_dim), jnp.float32, -bound, bound)
    b = jax.random.uniform(k_b, (hidden_dim,), jnp.float32, -bound, bound)

    batch = jnp.concatenate(
        [jnp.full((s,), i, dtype=jnp.int32) for i, s in enumerate(graph_sizes)]
    )
    node_slice = [0]
    for s in graph_sizes:
        node_slice.append(node_slice[-1] + s)
    slice_dict = {'x': node_slice}

    adj_batch = inner_product_decoder_forward(Z, batch, slice_dict, W, b)
    for a in adj_batch:
        jax.block_until_ready(a)

    # Pure-JAX f32 reference (kernel feeds the MXU bf16 inputs -> looser tolerance).
    Zh_ref = Z @ W.T + b
    ok = True
    for i, a in enumerate(adj_batch):
        s, e = node_slice[i], node_slice[i + 1]
        ref = jax.nn.sigmoid(Zh_ref[s:e] @ Zh_ref[s:e].T)
        ok = ok and bool(jnp.allclose(a, ref, atol=2e-2, rtol=2e-2))
    assert ok, "Pallas result mismatches JAX reference"

    print("KERNEL_OK")
</pallas_src>

<mosaic_0001>
module attributes {stable_mosaic.version = 11 : i64} {
  func.func @_fc1_kernel(%arg0: i32, %arg1: i32, %arg2: memref<1x128x128xbf16, #tpu.memory_space<vmem>>, %arg3: memref<128x128xbf16, #tpu.memory_space<vmem>>, %arg4: memref<1x128xf32, #tpu.memory_space<vmem>>, %arg5: memref<1x128x128xbf16, #tpu.memory_space<vmem>>) attributes {dimension_semantics = [#tpu.dimension_semantics<parallel>, #tpu.dimension_semantics<parallel>], iteration_bounds = array<i64: 3, 1>, scalar_prefetch = 0 : i64, scratch_operands = 0 : i64, tpu.core_type = #tpu.core_type<tc>, window_params = [{transform_indices = @transform_0, window_bounds = array<i64: 1, 128, 128>}, {pipeline_mode = #tpu.pipeline_mode<synchronous>, transform_indices = @transform_1, window_bounds = array<i64: 128, 128>}, {pipeline_mode = #tpu.pipeline_mode<synchronous>, transform_indices = @transform_2, window_bounds = array<i64: 1, 128>}, {transform_indices = @transform_3, window_bounds = array<i64: 1, 128, 128>}]} {
    %c0 = arith.constant 0 : index
    %c0_0 = arith.constant 0 : index
    %c0_1 = arith.constant 0 : index
    %0 = vector.load %arg2[%c0, %c0_0, %c0_1] : memref<1x128x128xbf16, #tpu.memory_space<vmem>>, vector<1x128x128xbf16>
    %1 = vector.shape_cast %0 : vector<1x128x128xbf16> to vector<128x128xbf16>
    %c0_2 = arith.constant 0 : index
    %c0_3 = arith.constant 0 : index
    %2 = vector.load %arg3[%c0_2, %c0_3] : memref<128x128xbf16, #tpu.memory_space<vmem>>, vector<128x128xbf16>
    %cst = arith.constant dense<0.000000e+00> : vector<128x128xf32>
    %3 = tpu.matmul %1, %2, %cst {dimension_numbers = #tpu.dot_dimension_numbers<[1], [0], [0], [1], [0, 0, 1, 1], [], []>} : vector<128x128xbf16>, vector<128x128xbf16>, vector<128x128xf32> -> vector<128x128xf32>
    %c0_4 = arith.constant 0 : index
    %c0_5 = arith.constant 0 : index
    %4 = vector.load %arg4[%c0_4, %c0_5] : memref<1x128xf32, #tpu.memory_space<vmem>>, vector<1x128xf32>
    %5 = vector.broadcast %4 : vector<1x128xf32> to vector<128x128xf32>
    %6 = arith.addf %3, %5 : vector<128x128xf32>
    %7 = arith.truncf %6 : vector<128x128xf32> to vector<128x128xbf16>
    %c0_6 = arith.constant 0 : index
    %c0_7 = arith.constant 0 : index
    %c0_8 = arith.constant 0 : index
    %8 = vector.load %arg5[%c0_6, %c0_7, %c0_8] : memref<1x128x128xbf16, #tpu.memory_space<vmem>>, vector<1x128x128xbf16>
    %9 = vector.shape_cast %8 : vector<1x128x128xbf16> to vector<128x128xbf16>
    %10 = vector.shape_cast %7 : vector<128x128xbf16> to vector<1x128x128xbf16>
    tpu.vector_store %arg5[%c0_6, %c0_7, %c0_8], %10 {strides = array<i32>} : memref<1x128x128xbf16, #tpu.memory_space<vmem>>, vector<1x128x128xbf16>,
    return
  }
  func.func @transform_0(%arg0: i32, %arg1: i32) -> (i32, i32, i32) {
    %c0_i32 = arith.constant 0 : i32
    %c0_i32_0 = arith.constant 0 : i32
    return %arg0, %arg1, %c0_i32 : i32, i32, i32
  }
  func.func @transform_1(%arg0: i32, %arg1: i32) -> (i32, i32) {
    %c0_i32 = arith.constant 0 : i32
    %c0_i32_0 = arith.constant 0 : i32
    %c0_i32_1 = arith.constant 0 : i32
    return %c0_i32, %c0_i32_0 : i32, i32
  }
  func.func @transform_2(%arg0: i32, %arg1: i32) -> (i32, i32) {
    %c0_i32 = arith.constant 0 : i32
    %c0_i32_0 = arith.constant 0 : i32
    %c0_i32_1 = arith.constant 0 : i32
    return %c0_i32, %c0_i32_0 : i32, i32
  }
  func.func @transform_3(%arg0: i32, %arg1: i32) -> (i32, i32, i32) {
    %c0_i32 = arith.constant 0 : i32
    %c0_i32_0 = arith.constant 0 : i32
    return %arg0, %arg1, %c0_i32 : i32, i32, i32
  }
}

module attributes {stable_mosaic.version = 11 : i64} {
  func.func @_gram_sigmoid_kernel(%arg0: i32, %arg1: i32, %arg2: i32, %arg3: memref<3xi32, #tpu.memory_space<smem>>, %arg4: memref<1x128x128xbf16, #tpu.memory_space<vmem>>, %arg5: memref<1x128x128xbf16, #tpu.memory_space<vmem>>, %arg6: memref<1x128x128xf32, #tpu.memory_space<vmem>>) attributes {dimension_semantics = [#tpu.dimension_semantics<parallel>, #tpu.dimension_semantics<parallel>, #tpu.dimension_semantics<arbitrary>], iteration_bounds = array<i64: 3, 1, 1>, scalar_prefetch = 1 : i64, scratch_operands = 0 : i64, tpu.core_type = #tpu.core_type<tc>, window_params = [{transform_indices = @transform_0, window_bounds = array<i64: 1, 128, 128>}, {transform_indices = @transform_1, window_bounds = array<i64: 1, 128, 128>}, {transform_indices = @transform_2, window_bounds = array<i64: 1, 128, 128>}]} {
    %0 = arith.index_cast %arg0 : i32 to index
    %1 = memref.load %arg3[%0] : memref<3xi32, #tpu.memory_space<smem>>
    %c128_i32 = arith.constant 128 : i32
    %2 = arith.muli %arg1, %c128_i32 : i32
    %3 = arith.cmpi slt, %2, %1 : i32
    %c128_i32_0 = arith.constant 128 : i32
    %4 = arith.muli %arg2, %c128_i32_0 : i32
    %5 = arith.cmpi slt, %4, %1 : i32
    %6 = arith.andi %3, %5 : i1
    %7 = arith.extui %6 : i1 to i32
    %c0_i32 = arith.constant 0 : i32
    %8 = arith.cmpi ne, %7, %c0_i32 : i32
    scf.if %8 {
      %c0 = arith.constant 0 : index
      %c0_1 = arith.constant 0 : index
      %c0_2 = arith.constant 0 : index
      %9 = vector.load %arg4[%c0, %c0_1, %c0_2] : memref<1x128x128xbf16, #tpu.memory_space<vmem>>, vector<1x128x128xbf16>
      %10 = vector.shape_cast %9 : vector<1x128x128xbf16> to vector<128x128xbf16>
      %c0_3 = arith.constant 0 : index
      %c0_4 = arith.constant 0 : index
      %c0_5 = arith.constant 0 : index
      %11 = vector.load %arg5[%c0_3, %c0_4, %c0_5] : memref<1x128x128xbf16, #tpu.memory_space<vmem>>, vector<1x128x128xbf16>
      %12 = vector.shape_cast %11 : vector<1x128x128xbf16> to vector<128x128xbf16>
      %cst = arith.constant dense<0.000000e+00> : vector<128x128xf32>
      %13 = tpu.matmul %10, %12, %cst {dimension_numbers = #tpu.dot_dimension_numbers<[1], [1], [0], [0], [0, 0, 1, 0], [], []>} : vector<128x128xbf16>, vector<128x128xbf16>, vector<128x128xf32> -> vector<128x128xf32>
      %cst_6 = arith.constant 5.000000e-01 : f32
      %14 = vector.broadcast %cst_6 : f32 to vector<128x128xf32>
      %15 = arith.mulf %14, %13 : vector<128x128xf32>
      %16 = math.tanh %15 : vector<128x128xf32>
      %cst_7 = arith.constant 5.000000e-01 : f32
      %17 = vector.broadcast %cst_7 : f32 to vector<128x128xf32>
      %18 = arith.mulf %17, %16 : vector<128x128xf32>
      %cst_8 = arith.constant 5.000000e-01 : f32
      %19 = vector.broadcast %cst_8 : f32 to vector<128x128xf32>
      %20 = arith.addf %18, %19 : vector<128x128xf32>
      %c0_9 = arith.constant 0 : index
      %c0_10 = arith.constant 0 : index
      %c0_11 = arith.constant 0 : index
      %21 = vector.load %arg6[%c0_9, %c0_10, %c0_11] : memref<1x128x128xf32, #tpu.memory_space<vmem>>, vector<1x128x128xf32>
      %22 = vector.shape_cast %21 : vector<1x128x128xf32> to vector<128x128xf32>
      %23 = vector.shape_cast %20 : vector<128x128xf32> to vector<1x128x128xf32>
      tpu.vector_store %arg6[%c0_9, %c0_10, %c0_11], %23 {strides = array<i32>} : memref<1x128x128xf32, #tpu.memory_space<vmem>>, vector<1x128x128xf32>,
    } else {
    }
    return
  }
  func.func @transform_0(%arg0: i32, %arg1: i32, %arg2: i32, %arg3: memref<3xi32, #tpu.memory_space<smem>>) -> (i32, i32, i32) {
    %c0_i32 = arith.constant 0 : i32
    %c0_i32_0 = arith.constant 0 : i32
    return %arg0, %arg1, %c0_i32 : i32, i32, i32
  }
  func.func @transform_1(%arg0: i32, %arg1: i32, %arg2: i32, %arg3: memref<3xi32, #tpu.memory_space<smem>>) -> (i32, i32, i32) {
    %c0_i32 = arith.constant 0 : i32
    %c0_i32_0 = arith.constant 0 : i32
    return %arg0, %arg2, %c0_i32 : i32, i32, i32
  }
  func.func @transform_2(%arg0: i32, %arg1: i32, %arg2: i32, %arg3: memref<3xi32, #tpu.memory_space<smem>>) -> (i32, i32, i32) {
    %c0_i32 = arith.constant 0 : i32
    return %arg0, %arg1, %arg2 : i32, i32, i32
  }
}

</mosaic_0001>

<llo_original>
// kernel: _forward_impl.2
$region0: #{_forward_impl.2}
  #allocation0 [shape = 'u32[]', space=smem, size = 0x4, offset = 0x4, fixed_abs, tag = 'smem constant byte address 0x4 - core index']
  #allocation1 [shape = 'u32[144,128]{1,0:T(1,128)}', space=vmem, size = 0x12000, scoped, tag = 'internal scratch']
  %s0 = inlined_call_operand.vmem [shape: bf16[3,128,128], index: 0, kind: input, shape index: {}]
  %s1 = inlined_call_operand.vmem [shape: bf16[128,128], index: 1, kind: input, shape index: {}]
  %s2 = inlined_call_operand.vmem [shape: f32[1,128], index: 2, kind: input, shape index: {}]
  %s3 = inlined_call_operand.vmem [shape: bf16[3,128,128], index: 3, kind: output, shape index: {}]
  %s4 = sld [smem:[#allocation0]]
  $region45: #{_forward_impl.2} parent=0
    _
  %s6 = ssub.s32 1, %s4
  %s7 = scalar_select 0, %s6, %s4
  loop: start=0, step=1, limit=5
  $region2: #{_forward_impl.2} parent=0 // loop_pre_header
    _
  $region3: #{_forward_impl.2} parent=0 // loop_header
    %s9 = sphi 0, %s13
    %p10 = scmp.ge.s32.totalorder %s9, 5
    %s16 = sphi 0, %s28
    %s17 = sphi 0, %s24
    %s18 = sphi 0, %s16
    %s19 = sphi 0, %s17
    %s20 = sphi 0, %s18
    %s21 = sphi 0, %s19
    %s33 = sphi 0, %s35
    %s36 = sphi 0, %s33
    %s37 = sphi 0, %s36
    %s53 = sphi 0, %s37
    %s57 = sphi 0, %s57
    %s59 = sphi 0, %s57
    %s60 = sphi 0, %s59
    %s74 = sphi 0, %s60
    %s78 = sphi 0, %s78
    %s80 = sphi 0, %s78
    %s81 = sphi 0, %s80
    %s95 = sphi 0, %s81
    %s103 = sphi 0, %s105
    %s106 = sphi 0, %s103
    %s107 = sphi 0, %s106
    %s123 = sphi 0, %s107
  $region4: #{_forward_impl.2} parent=0 // loop_header_branch
    %12 = sbr.rel (%p10) target = $region8
  $region5: #{_forward_impl.2} parent=0 // loop_body
    %s14 = ssub.s32 %s9, 1
    %s15 = ssub.s32 %s9, 2
    %s22 = sadd.s32 1, %s17
    %p23 = scmp.ge.s32.totalorder %s22, 1
    %s24 = scalar_select %p23, 0, %s22
    %s25 = sadd.s32 1, %s16
    %s26 = scalar_select %p23, %s25, %s16
    %p27 = scmp.ge.s32.totalorder %s26, 3
    %s28 = scalar_select %p27, 0, %s26
    %s29 = ssub.s32 %s16, %s28
    %s30 = ssub.s32 %s17, %s24
    %s31 = sor.u32 %s29, %s30
    %p32 = scmp.eq.s32.totalorder %s31, 0
    %s34 = sadd.s32 %s33, 1
    %s35 = scalar_select %p32, %s33, %s34
    %p38 = pneg %p32
    %p39 = scmp.eq.s32.totalorder %s9, 2
    %p40 = por %p38, %p39
    %p41 = scmp.ne.s32.totalorder %s33, %s36
    %p42 = scmp.eq.s32.totalorder %s9, 0
    %p43 = por %p41, %p42
    %p44 = scmp.ne.s32.totalorder %s33, %s36
    %p45 = scmp.eq.s32.totalorder %s14, 2
    %p46 = por %p44, %p45
    %p47 = scmp.ne.s32.totalorder %s36, %s37
    %p48 = scmp.eq.s32.totalorder %s14, 0
    %p49 = por %p47, %p48
    %p50 = scmp.ne.s32.totalorder %s36, %s37
    %p51 = scmp.eq.s32.totalorder %s15, 2
    %p52 = por %p50, %p51
    %p54 = scmp.ne.s32.totalorder %s37, %s53
    %p55 = scmp.eq.s32.totalorder %s15, 0
    %p56 = por %p54, %p55
    %s58 = sadd.s32 %s57, 1
    %p61 = scmp.eq.s32.totalorder %s9, 2
    %p62 = scmp.ne.s32.totalorder %s57, %s59
    %p63 = scmp.eq.s32.totalorder %s9, 0
    %p64 = por %p62, %p63
    %p65 = scmp.ne.s32.totalorder %s57, %s59
    %p66 = scmp.eq.s32.totalorder %s14, 2
    %p67 = por %p65, %p66
    %p68 = scmp.ne.s32.totalorder %s59, %s60
    %p69 = scmp.eq.s32.totalorder %s14, 0
    %p70 = por %p68, %p69
    %p71 = scmp.ne.s32.totalorder %s59, %s60
    %p72 = scmp.eq.s32.totalorder %s15, 2
    %p73 = por %p71, %p72
    %p75 = scmp.ne.s32.totalorder %s60, %s74
    %p76 = scmp.eq.s32.totalorder %s15, 0
    %p77 = por %p75, %p76
    %s79 = sadd.s32 %s78, 1
    %p82 = scmp.eq.s32.totalorder %s9, 2
    %p83 = scmp.ne.s32.totalorder %s78, %s80
    %p84 = scmp.eq.s32.totalorder %s9, 0
    %p85 = por %p83, %p84
    %p86 = scmp.ne.s32.totalorder %s78, %s80
    %p87 = scmp.eq.s32.totalorder %s14, 2
    %p88 = por %p86, %p87
    %p89 = scmp.ne.s32.totalorder %s80, %s81
    %p90 = scmp.eq.s32.totalorder %s14, 0
    %p91 = por %p89, %p90
    %p92 = scmp.ne.s32.totalorder %s80, %s81
    %p93 = scmp.eq.s32.totalorder %s15, 2
    %p94 = por %p92, %p93
    %p96 = scmp.ne.s32.totalorder %s81, %s95
    %p97 = scmp.eq.s32.totalorder %s15, 0
    %p98 = por %p96, %p97
    %s99 = ssub.s32 %s16, %s28
    %s100 = ssub.s32 %s17, %s24
    %s101 = sor.u32 %s99, %s100
    %p102 = scmp.eq.s32.totalorder %s101, 0
    %s104 = sadd.s32 %s103, 1
    %s105 = scalar_select %p102, %s103, %s104
    %p108 = pneg %p102
    %p109 = scmp.eq.s32.totalorder %s9, 2
    %p110 = por %p108, %p109
    %p111 = scmp.ne.s32.totalorder %s103, %s106
    %p112 = scmp.eq.s32.totalorder %s9, 0
    %p113 = por %p111, %p112
    %p114 = scmp.ne.s32.totalorder %s103, %s106
    %p115 = scmp.eq.s32.totalorder %s14, 2
    %p116 = por %p114, %p115
    %p117 = scmp.ne.s32.totalorder %s106, %s107
    %p118 = scmp.eq.s32.totalorder %s14, 0
    %p119 = por %p117, %p118
    %p120 = scmp.ne.s32.totalorder %s106, %s107
    %p121 = scmp.eq.s32.totalorder %s15, 2
    %p122 = por %p120, %p121
    %p124 = scmp.ne.s32.totalorder %s107, %s123
    %p125 = scmp.eq.s32.totalorder %s15, 0
    %p126 = por %p124, %p125
    %p127 = scmp.le.s32.totalorder 1, %s9
    %p128 = scmp.lt.s32.totalorder %s9, 4
    %p129 = pnand %p127, %p128
    %p130 = pneg %p129
    // Predicated region
    $region9: #{_forward_impl.2} parent=5 // pred_check
      _
    $region10: #{_forward_impl.2} parent=5 // pred_check_branch
      %132 = sbr.rel (%p129) target = $region12
    $region11: #{_forward_impl.2} parent=5 // pred_region
      %s133 = ssub.s32 %s9, 1
      // Predicated region
      $region13: #{_forward_impl.2} parent=11 // pred_check
        %p134 = pneg %p70
      $region14: #{_forward_impl.2} parent=11 // pred_check_branch
        %136 = sbr.rel (%p134) target = $region16
      $region15: #{_forward_impl.2} parent=11 // pred_region
        _
      $region16: #{_forward_impl.2} parent=11 // pred_fallthru
        _
      // Predicated region
      $region17: #{_forward_impl.2} parent=11 // pred_check
        %p137 = pneg %p91
      $region18: #{_forward_impl.2} parent=11 // pred_check_branch
        %139 = sbr.rel (%p137) target = $region20
      $region19: #{_forward_impl.2} parent=11 // pred_region
        _
      $region20: #{_forward_impl.2} parent=11 // pred_fallthru
        _
    $region12: #{_forward_impl.2} parent=5 // pred_fallthru
      _
    %p140 = scmp.lt.s32.totalorder %s9, 3
    // Predicated region
    $region21: #{_forward_impl.2} parent=5 // pred_check
      %p141 = pneg %p140
    $region22: #{_forward_impl.2} parent=5 // pred_check_branch
      %143 = sbr.rel (%p141) target = $region24
    $region23: #{_forward_impl.2} parent=5 // pred_region
      // Predicated region
      $region25: #{_forward_impl.2} parent=23 // pred_check
        %p144 = pneg %p43
      $region26: #{_forward_impl.2} parent=23 // pred_check_branch
        %146 = sbr.rel (%p144) target = $region28
      $region27: #{_forward_impl.2} parent=23 // pred_region
        %s147 = smul.u32 16, %s17
        %p148 = scmp.lt.s32.totalorder %s16, 2
        %s149 = scalar_select %p148, %s16, 2
        %p150 = scmp.lt.s32.totalorder %s147, 15
        %s151 = scalar_select %p150, %s147, 15
        %s152 = smul.addr %s149, 16
        %s153 = sadd.s32 %s151, %s152
        %s154 = smul.addr %s153, 4
        %s155 = scalar_lea.vmem %s0, %s154
        %s156 = smul.u32 16, %s17
      $region28: #{_forward_impl.2} parent=23 // pred_fallthru
        _
    $region24: #{_forward_impl.2} parent=5 // pred_fallthru
      _
    %p157 = scmp.le.s32.totalorder 1, %s9
    %p158 = scmp.lt.s32.totalorder %s9, 4
    %p159 = pnand %p157, %p158
    %p160 = pneg %p159
    // Predicated region
    $region29: #{_forward_impl.2} parent=5 // pred_check
      _
    $region30: #{_forward_impl.2} parent=5 // pred_check_branch
      %162 = sbr.rel (%p159) target = $region32
    $region31: #{_forward_impl.2} parent=5 // pred_region
      %s163 = ssub.s32 %s9, 1
      %s164 = smul.u32 16, %s19
      %p165 = scmp.lt.s32.totalorder %s18, 2
      %s166 = scalar_select %p165, %s18, 2
      %p167 = scmp.lt.s32.totalorder %s164, 15
      %s168 = scalar_select %p167, %s164, 15
      %s169 = smul.addr %s166, 16
      %s170 = sadd.s32 %s168, %s169
      %s171 = smul.addr %s170, 4
      %s172 = scalar_lea.vmem %s0, %s171
      %p173 = pneg %p49
      %p174 = pneg %p46
      %p175 = pneg %p70
      %p176 = pneg %p67
      %p177 = pneg %p91
      %p178 = pneg %p88
      %p179 = pneg %p119
      %p180 = pneg %p116
      %s181 = smul.u32 16, %s19
      %p182 = scmp.lt.s32.totalorder %s18, 2
      %s183 = scalar_select %p182, %s18, 2
      %p184 = scmp.lt.s32.totalorder %s181, 15
      %s185 = scalar_select %p184, %s181, 15
      %s186 = smul.addr %s183, 16
      %s187 = sadd.s32 %s185, %s186
      %s188 = smul.addr %s187, 4
      %s189 = scalar_lea.vmem %s3, %s188
      %s190 = smul.u32 16, %s19
      %p191 = scmp.lt.s32.totalorder %s18, 2
      %s192 = scalar_select %p191, %s18, 2
      %p193 = scmp.lt.s32.totalorder %s190, 15
      %s194 = scalar_select %p193, %s190, 15
      %s195 = smul.addr %s192, 16
      %s196 = sadd.s32 %s194, %s195
      %s197 = smul.addr %s196, 4
      %s198 = scalar_lea.vmem %s0, %s197
      %s199 = smul.u32 16, %s19
      %s200 = smul.u32 16, %s19
      %p201 = scmp.lt.s32.totalorder %s18, 2
      %s202 = scalar_select %p201, %s18, 2
      %p203 = scmp.lt.s32.totalorder %s200, 15
      %s204 = scalar_select %p203, %s200, 15
      %s205 = smul.addr %s202, 16
      %s206 = sadd.s32 %s204, %s205
      %s207 = smul.addr %s206, 4
      %s208 = scalar_lea.vmem %s3, %s207
      %s209 = smul.u32 16, %s19
      %v211 = vld [vmem:[%s198] sm:$0xf]
      %v212 = vld [vmem:[%s198 + $0x4] sm:$0xf]
      %v213 = vld [vmem:[%s198 + $0x8] sm:$0xf]
      %v214 = vld [vmem:[%s198 + $0xc] sm:$0xf]
      %v215 = vld [vmem:[%s198 + $0x10] sm:$0xf]
      %v216 = vld [vmem:[%s198 + $0x14] sm:$0xf]
      %v217 = vld [vmem:[%s198 + $0x18] sm:$0xf]
      %v218 = vld [vmem:[%s198 + $0x1c] sm:$0xf]
      %v219 = vld [vmem:[%s198 + $0x20] sm:$0xf]
      %v220 = vld [vmem:[%s198 + $0x24] sm:$0xf]
      %v221 = vld [vmem:[%s198 + $0x28] sm:$0xf]
      %v222 = vld [vmem:[%s198 + $0x2c] sm:$0xf]
      %v223 = vld [vmem:[%s198 + $0x30] sm:$0xf]
      %v224 = vld [vmem:[%s198 + $0x34] sm:$0xf]
      %v225 = vld [vmem:[%s198 + $0x38] sm:$0xf]
      %v226 = vld [vmem:[%s198 + $0x3c] sm:$0xf]
      %v227 = vld [vmem:[%s1] sm:$0xf]
      %v228 = vld [vmem:[%s1 + $0x4] sm:$0xf]
      %v229 = vld [vmem:[%s1 + $0x8] sm:$0xf]
      %v230 = vld [vmem:[%s1 + $0xc] sm:$0xf]
      %v231 = vld [vmem:[%s1 + $0x10] sm:$0xf]
      %v232 = vld [vmem:[%s1 + $0x14] sm:$0xf]
      %v233 = vld [vmem:[%s1 + $0x18] sm:$0xf]
      %v234 = vld [vmem:[%s1 + $0x1c] sm:$0xf]
      %v235 = vld [vmem:[%s1 + $0x20] sm:$0xf]
      %v236 = vld [vmem:[%s1 + $0x24] sm:$0xf]
      %v237 = vld [vmem:[%s1 + $0x28] sm:$0xf]
      %v238 = vld [vmem:[%s1 + $0x2c] sm:$0xf]
      %v239 = vld [vmem:[%s1 + $0x30] sm:$0xf]
      %v240 = vld [vmem:[%s1 + $0x34] sm:$0xf]
      %v241 = vld [vmem:[%s1 + $0x38] sm:$0xf]
      %v242 = vld [vmem:[%s1 + $0x3c] sm:$0xf]
      %v243 = vld [vmem:[%s2] sm:$0x1]
      %v245 = vlaneseq
      %v246 = vshrl.u32 %v245, 7
      %v247 = vsub.s32 0, %v246
      %v248 = vrot.slane %v243, %v247
      %v266 = vunpack.c.l.b16 %v211
      %v267 = vunpack.c.l.b16 %v212
      %v268 = vunpack.c.l.b16 %v213
      %v269 = vunpack.c.l.b16 %v214
      %v270 = vunpack.c.l.b16 %v215
      %v271 = vunpack.c.l.b16 %v216
      %v272 = vunpack.c.l.b16 %v217
      %v273 = vunpack.c.l.b16 %v218
      %v274 = vunpack.c.l.b16 %v219
      %v275 = vunpack.c.l.b16 %v220
      %v276 = vunpack.c.l.b16 %v221
      %v277 = vunpack.c.l.b16 %v222
      %v278 = vunpack.c.l.b16 %v223
      %v279 = vunpack.c.l.b16 %v224
      %v280 = vunpack.c.l.b16 %v225
      %v281 = vunpack.c.l.b16 %v226
      %v282 = vpack.c.b16 %v267, %v266
      %v283 = vpack.c.b16 %v269, %v268
      %v284 = vpack.c.b16 %v271, %v270
      %v285 = vpack.c.b16 %v273, %v272
      %v286 = vpack.c.b16 %v275, %v274
      %v287 = vpack.c.b16 %v277, %v276
      %v288 = vpack.c.b16 %v279, %v278
      %v289 = vpack.c.b16 %v281, %v280
      %v314 = vunpack.c.l.b16 %v227
      %v315 = vunpack.c.l.b16 %v228
      %v316 = vunpack.c.l.b16 %v229
      %v317 = vunpack.c.l.b16 %v230
      %v318 = vunpack.c.l.b16 %v231
      %v319 = vunpack.c.l.b16 %v232
      %v320 = vunpack.c.l.b16 %v233
      %v321 = vunpack.c.l.b16 %v234
      %v322 = vunpack.c.l.b16 %v235
      %v323 = vunpack.c.l.b16 %v236
      %v324 = vunpack.c.l.b16 %v237
      %v325 = vunpack.c.l.b16 %v238
      %v326 = vunpack.c.l.b16 %v239
      %v327 = vunpack.c.l.b16 %v240
      %v328 = vunpack.c.l.b16 %v241
      %v329 = vunpack.c.l.b16 %v242
      %v330 = vpack.c.b16 %v315, %v314
      %v331 = vpack.c.b16 %v317, %v316
      %v332 = vpack.c.b16 %v319, %v318
      %v333 = vpack.c.b16 %v321, %v320
      %v334 = vpack.c.b16 %v323, %v322
      %v335 = vpack.c.b16 %v325, %v324
      %v336 = vpack.c.b16 %v327, %v326
      %v337 = vpack.c.b16 %v329, %v328
      %346 = vmatprep.subr.bf16.mxu0 0
      %347 = vmatpush1.bf16.msra.mxu0 %v330
      %348 = vmatprep.subr.bf16.mxu0 0
      %349 = vmatpush1.bf16.msra.mxu0 %v331
      %350 = vmatprep.subr.bf16.mxu0 0
      %351 = vmatpush1.bf16.msra.mxu0 %v332
      %352 = vmatprep.subr.bf16.mxu0 0
      %353 = vmatpush1.bf16.msra.mxu0 %v333
      %354 = vmatprep.subr.bf16.mxu0 0
      %355 = vmatpush1.bf16.msra.mxu0 %v334
      %356 = vmatprep.subr.bf16.mxu0 0
      %357 = vmatpush1.bf16.msra.mxu0 %v335
      %358 = vmatprep.subr.bf16.mxu0 0
      %359 = vmatpush1.bf16.msra.mxu0 %v336
      %360 = vmatprep.subr.bf16.mxu0 0
      %361 = vmatpush1.bf16.msra.mxu0 %v337
      %362 = vmatprep.subr.bf16.mxu0 0
      %363 = vmatpush1.bf16.msra.mxu0 0
      %364 = vmatprep.subr.bf16.mxu0 0
      %365 = vmatpush1.bf16.msra.mxu0 0
      %366 = vmatprep.subr.bf16.mxu0 0
      %367 = vmatpush1.bf16.msra.mxu0 0
      %368 = vmatprep.subr.bf16.mxu0 0
      %369 = vmatpush1.bf16.msra.mxu0 0
      %370 = vmatprep.subr.bf16.mxu0 0
      %371 = vmatpush1.bf16.msra.mxu0 0
      %372 = vmatprep.subr.bf16.mxu0 0
      %373 = vmatpush1.bf16.msra.mxu0 0
      %374 = vmatprep.subr.bf16.mxu0 0
      %375 = vmatpush1.bf16.msra.mxu0 0
      %376 = vmatprep.subr.bf16.mxu0 0
      %377 = vmatpush1.bf16.msra.mxu0 0
      %378 = vmatprep.mubr.bf16.mxu0 0
      %379 = vmatmul.mubr.bf16.gmra.mrb[0].mxu0 %v282
      %v380 = vpop.f32.mrb[0].mxu0
      %v381 = vadd.f32 %v248, %v380
      %v382 = vpop.f32.mrb[0].mxu0
      %v383 = vpop.f32.mrb[0].mxu0
      %v384 = vadd.f32 %v248, %v383
      %v385 = vpop.f32.mrb[0].mxu0
      %386 = vmatprep.mubr.bf16.mxu0 0
      %387 = vmatmul.mubr.bf16.gmra.mrb[0].mxu0 %v283
      %v388 = vpop.f32.mrb[0].mxu0
      %v389 = vadd.f32 %v248, %v388
      %v390 = vpop.f32.mrb[0].mxu0
      %v391 = vpop.f32.mrb[0].mxu0
      %v392 = vadd.f32 %v248, %v391
      %v393 = vpop.f32.mrb[0].mxu0
      %394 = vmatprep.mubr.bf16.mxu0 0
      %395 = vmatmul.mubr.bf16.gmra.mrb[0].mxu0 %v284
      %v396 = vpop.f32.mrb[0].mxu0
      %v397 = vadd.f32 %v248, %v396
      %v398 = vpop.f32.mrb[0].mxu0
      %v399 = vpop.f32.mrb[0].mxu0
      %v400 = vadd.f32 %v248, %v399
      %v401 = vpop.f32.mrb[0].mxu0
      %402 = vmatprep.mubr.bf16.mxu0 0
      %403 = vmatmul.mubr.bf16.gmra.mrb[0].mxu0 %v285
      %v404 = vpop.f32.mrb[0].mxu0
      %v405 = vadd.f32 %v248, %v404
      %v406 = vpop.f32.mrb[0].mxu0
      %v407 = vpop.f32.mrb[0].mxu0
      %v408 = vadd.f32 %v248, %v407
      %v409 = vpop.f32.mrb[0].mxu0
      %410 = vmatprep.mubr.bf16.mxu0 0
      %411 = vmatmul.mubr.bf16.gmra.mrb[0].mxu0 %v286
      %v412 = vpop.f32.mrb[0].mxu0
      %v413 = vadd.f32 %v248, %v412
      %v414 = vpop.f32.mrb[0].mxu0
      %v415 = vpop.f32.mrb[0].mxu0
      %v416 = vadd.f32 %v248, %v415
      %v417 = vpop.f32.mrb[0].mxu0
      %418 = vmatprep.mubr.bf16.mxu0 0
      %419 = vmatmul.mubr.bf16.gmra.mrb[0].mxu0 %v287
      %v420 = vpop.f32.mrb[0].mxu0
      %v421 = vadd.f32 %v248, %v420
      %v422 = vpop.f32.mrb[0].mxu0
      %v423 = vpop.f32.mrb[0].mxu0
      %v424 = vadd.f32 %v248, %v423
      %v425 = vpop.f32.mrb[0].mxu0
      %426 = vmatprep.mubr.bf16.mxu0 0
      %427 = vmatmul.mubr.bf16.gmra.mrb[0].mxu0 %v288
      %v428 = vpop.f32.mrb[0].mxu0
      %v429 = vadd.f32 %v248, %v428
      %v430 = vpop.f32.mrb[0].mxu0
      %v431 = vpop.f32.mrb[0].mxu0
      %v432 = vadd.f32 %v248, %v431
      %v433 = vpop.f32.mrb[0].mxu0
      %434 = vmatprep.mubr.bf16.mxu0 0
      %435 = vmatmul.mubr.bf16.gmra.mrb[0].mxu0 %v289
      %v436 = vpop.f32.mrb[0].mxu0
      %v437 = vadd.f32 %v248, %v436
      %v438 = vpop.f32.mrb[0].mxu0
      %v439 = vpop.f32.mrb[0].mxu0
      %v440 = vadd.f32 %v248, %v439
      %v441 = vpop.f32.mrb[0].mxu0
      %442 = vdwg.mxu0
      %v443 = vpack.c.bf16 %v384, %v381
      %v444 = vpack.c.bf16 %v392, %v389
      %v445 = vpack.c.bf16 %v400, %v397
      %v446 = vpack.c.bf16 %v408, %v405
      %v447 = vpack.c.bf16 %v416, %v413
      %v448 = vpack.c.bf16 %v424, %v421
      %v449 = vpack.c.bf16 %v432, %v429
      %v450 = vpack.c.bf16 %v440, %v437
      %v459 = vunpack.c.l.b16 %v443
      %v460 = vunpack.c.h.b16 %v443
      %v461 = vunpack.c.l.b16 %v444
      %v462 = vunpack.c.h.b16 %v444
      %v463 = vunpack.c.l.b16 %v445
      %v464 = vunpack.c.h.b16 %v445
      %v465 = vunpack.c.l.b16 %v446
      %v466 = vunpack.c.h.b16 %v446
      %v467 = vunpack.c.l.b16 %v447
      %v468 = vunpack.c.h.b16 %v447
      %v469 = vunpack.c.l.b16 %v448
      %v470 = vunpack.c.h.b16 %v448
      %v471 = vunpack.c.l.b16 %v449
      %v472 = vunpack.c.h.b16 %v449
      %v473 = vunpack.c.l.b16 %v450
      %v474 = vunpack.c.h.b16 %v450
      %v475 = vpack.c.b16 %v459, %v459
      %v476 = vpack.c.b16 %v460, %v460
      %v477 = vpack.c.b16 %v461, %v461
      %v478 = vpack.c.b16 %v462, %v462
      %v479 = vpack.c.b16 %v463, %v463
      %v480 = vpack.c.b16 %v464, %v464
      %v481 = vpack.c.b16 %v465, %v465
      %v482 = vpack.c.b16 %v466, %v466
      %v483 = vpack.c.b16 %v467, %v467
      %v484 = vpack.c.b16 %v468, %v468
      %v485 = vpack.c.b16 %v469, %v469
      %v486 = vpack.c.b16 %v470, %v470
      %v487 = vpack.c.b16 %v471, %v471
      %v488 = vpack.c.b16 %v472, %v472
      %v489 = vpack.c.b16 %v473, %v473
      %v490 = vpack.c.b16 %v474, %v474
      %507 = vst [vmem:[%s208] sm:$0xf] %v475
      %508 = vst [vmem:[%s208 + $0x4] sm:$0xf] %v476
      %509 = vst [vmem:[%s208 + $0x8] sm:$0xf] %v477
      %510 = vst [vmem:[%s208 + $0xc] sm:$0xf] %v478
      %511 = vst [vmem:[%s208 + $0x10] sm:$0xf] %v479
      %512 = vst [vmem:[%s208 + $0x14] sm:$0xf] %v480
      %513 = vst [vmem:[%s208 + $0x18] sm:$0xf] %v481
      %514 = vst [vmem:[%s208 + $0x1c] sm:$0xf] %v482
      %515 = vst [vmem:[%s208 + $0x20] sm:$0xf] %v483
      %516 = vst [vmem:[%s208 + $0x24] sm:$0xf] %v484
      %517 = vst [vmem:[%s208 + $0x28] sm:$0xf] %v485
      %518 = vst [vmem:[%s208 + $0x2c] sm:$0xf] %v486
      %519 = vst [vmem:[%s208 + $0x30] sm:$0xf] %v487
      %520 = vst [vmem:[%s208 + $0x34] sm:$0xf] %v488
      %521 = vst [vmem:[%s208 + $0x38] sm:$0xf] %v489
      %522 = vst [vmem:[%s208 + $0x3c] sm:$0xf] %v490
      %s523 = smul.u32 16, %s19
      %p524 = scmp.lt.s32.totalorder %s18, 2
      %s525 = scalar_select %p524, %s18, 2
      %p526 = scmp.lt.s32.totalorder %s523, 15
      %s527 = scalar_select %p526, %s523, 15
      %s528 = smul.addr %s525, 16
      %s529 = sadd.s32 %s527, %s528
      %s530 = smul.addr %s529, 4
      %s531 = scalar_lea.vmem %s3, %s530
      // Predicated region
      $region33: #{_forward_impl.2} parent=31 // pred_check
        %p532 = pneg %p116
      $region34: #{_forward_impl.2} parent=31 // pred_check_branch
        %534 = sbr.rel (%p532) target = $region36
      $region35: #{_forward_impl.2} parent=31 // pred_region
        %s535 = smul.u32 16, %s19
      $region36: #{_forward_impl.2} parent=31 // pred_fallthru
        _
    $region32: #{_forward_impl.2} parent=5 // pred_fallthru
      _
    %p536 = scmp.le.s32.totalorder 2, %s9
    // Predicated region
    $region37: #{_forward_impl.2} parent=5 // pred_check
      %p537 = pneg %p536
    $region38: #{_forward_impl.2} parent=5 // pred_check_branch
      %539 = sbr.rel (%p537) target = $region40
    $region39: #{_forward_impl.2} parent=5 // pred_region
      %s540 = ssub.s32 %s9, 2
      // Predicated region
      $region41: #{_forward_impl.2} parent=39 // pred_check
        %p541 = pneg %p122
      $region42: #{_forward_impl.2} parent=39 // pred_check_branch
        %543 = sbr.rel (%p541) target = $region44
      $region43: #{_forward_impl.2} parent=39 // pred_region
        %s544 = smul.u32 16, %s21
        %p545 = scmp.lt.s32.totalorder %s20, 2
        %s546 = scalar_select %p545, %s20, 2
        %p547 = scmp.lt.s32.totalorder %s544, 15
        %s548 = scalar_select %p547, %s544, 15
        %s549 = smul.addr %s546, 16
        %s550 = sadd.s32 %s548, %s549
        %s551 = smul.addr %s550, 4
        %s552 = scalar_lea.vmem %s3, %s551
      $region44: #{_forward_impl.2} parent=39 // pred_fallthru
        _
    $region40: #{_forward_impl.2} parent=5 // pred_fallthru
      _
  $region6: #{_forward_impl.2} parent=0 // loop_footer
    %s13 = sadd.s32 1, %s9
  $region7: #{_forward_impl.2} parent=0 // loop_footer_branch
    %8 = sbr.rel target = $region3
  $region8: #{_forward_impl.2} parent=0 // loop_exit
    _

// kernel: _forward_impl.3
$region0: #{_forward_impl.3}
  #allocation0 [shape = 'u32[]', space=smem, size = 0x4, offset = 0x4, fixed_abs, tag = 'smem constant byte address 0x4 - core index']
  #allocation1 [shape = 'u32[144,128]{1,0:T(1,128)}', space=vmem, size = 0x12000, scoped, tag = 'internal scratch']
  #allocation2 [shape = 's32[1]{0}', space=sflag, size = 0x4, scoped, tag = 'scoped memory for _forward_impl.3']
  #allocation3 [shape = 'u8[512]{0}', space=smem, size = 0x200, scoped, tag = 'prefetched SMEM operand 0']
  %s0 = inlined_call_operand.vmem [shape: s32[3], index: 0, kind: input, shape index: {}]
  %s1 = inlined_call_operand.vmem [shape: bf16[3,128,128], index: 1, kind: input, shape index: {}, may-alias: {1,2}]
  %s2 = inlined_call_operand.vmem [shape: bf16[3,128,128], index: 2, kind: input, shape index: {}, may-alias: {1,2}]
  %s3 = inlined_call_operand.vmem [shape: f32[3,128,128], index: 3, kind: output, shape index: {}]
  %s4 = sld [smem:[#allocation0]]
  $region45: #{_forward_impl.3} parent=0
    _
  %s6 = ssub.s32 1, %s4
  %s7 = scalar_select 0, %s6, %s4
  %s8 = sshll.u32 %s0, 4
  %s9 = int_to_ptr.vmem [resolvable:$true] %s8
  %11 = dma.vmem_to_smem %s9, 16, [#allocation3], [#allocation2]
  %12 = dma.done [#allocation2], 16
  %13 = sfence
  loop: start=0, step=1, limit=5
  $region2: #{_forward_impl.3} parent=0 // loop_pre_header
    _
  $region3: #{_forward_impl.3} parent=0 // loop_header
    %s15 = sphi 0, %s19
    %p16 = scmp.ge.s32.totalorder %s15, 5
    %s22 = sphi 0, %s41
    %s23 = sphi 0, %s37
    %s24 = sphi 0, %s33
    %s25 = sphi 0, %s22
    %s26 = sphi 0, %s23
    %s27 = sphi 0, %s24
    %s28 = sphi 0, %s25
    %s29 = sphi 0, %s26
    %s30 = sphi 0, %s27
    %s46 = sphi 0, %s48
    %s49 = sphi 0, %s46
    %s50 = sphi 0, %s49
    %s66 = sphi 0, %s50
    %s74 = sphi 0, %s76
    %s77 = sphi 0, %s74
    %s78 = sphi 0, %s77
    %s94 = sphi 0, %s78
    %s104 = sphi 0, %s106
    %s107 = sphi 0, %s104
    %s108 = sphi 0, %s107
    %s124 = sphi 0, %s108
  $region4: #{_forward_impl.3} parent=0 // loop_header_branch
    %18 = sbr.rel (%p16) target = $region8
  $region5: #{_forward_impl.3} parent=0 // loop_body
    %s20 = ssub.s32 %s15, 1
    %s21 = ssub.s32 %s15, 2
    %s31 = sadd.s32 1, %s24
    %p32 = scmp.ge.s32.totalorder %s31, 1
    %s33 = scalar_select %p32, 0, %s31
    %s34 = sadd.s32 1, %s23
    %s35 = scalar_select %p32, %s34, %s23
    %p36 = scmp.ge.s32.totalorder %s35, 1
    %s37 = scalar_select %p36, 0, %s35
    %s38 = sadd.s32 1, %s22
    %s39 = scalar_select %p36, %s38, %s22
    %p40 = scmp.ge.s32.totalorder %s39, 3
    %s41 = scalar_select %p40, 0, %s39
    %s42 = ssub.s32 %s22, %s41
    %s43 = ssub.s32 %s23, %s37
    %s44 = sor.u32 %s42, %s43
    %p45 = scmp.eq.s32.totalorder %s44, 0
    %s47 = sadd.s32 %s46, 1
    %s48 = scalar_select %p45, %s46, %s47
    %p51 = pneg %p45
    %p52 = scmp.eq.s32.totalorder %s15, 2
    %p53 = por %p51, %p52
    %p54 = scmp.ne.s32.totalorder %s46, %s49
    %p55 = scmp.eq.s32.totalorder %s15, 0
    %p56 = por %p54, %p55
    %p57 = scmp.ne.s32.totalorder %s46, %s49
    %p58 = scmp.eq.s32.totalorder %s20, 2
    %p59 = por %p57, %p58
    %p60 = scmp.ne.s32.totalorder %s49, %s50
    %p61 = scmp.eq.s32.totalorder %s20, 0
    %p62 = por %p60, %p61
    %p63 = scmp.ne.s32.totalorder %s49, %s50
    %p64 = scmp.eq.s32.totalorder %s21, 2
    %p65 = por %p63, %p64
    %p67 = scmp.ne.s32.totalorder %s50, %s66
    %p68 = scmp.eq.s32.totalorder %s21, 0
    %p69 = por %p67, %p68
    %s70 = ssub.s32 %s22, %s41
    %s71 = ssub.s32 %s24, %s33
    %s72 = sor.u32 %s70, %s71
    %p73 = scmp.eq.s32.totalorder %s72, 0
    %s75 = sadd.s32 %s74, 1
    %s76 = scalar_select %p73, %s74, %s75
    %p79 = pneg %p73
    %p80 = scmp.eq.s32.totalorder %s15, 2
    %p81 = por %p79, %p80
    %p82 = scmp.ne.s32.totalorder %s74, %s77
    %p83 = scmp.eq.s32.totalorder %s15, 0
    %p84 = por %p82, %p83
    %p85 = scmp.ne.s32.totalorder %s74, %s77
    %p86 = scmp.eq.s32.totalorder %s20, 2
    %p87 = por %p85, %p86
    %p88 = scmp.ne.s32.totalorder %s77, %s78
    %p89 = scmp.eq.s32.totalorder %s20, 0
    %p90 = por %p88, %p89
    %p91 = scmp.ne.s32.totalorder %s77, %s78
    %p92 = scmp.eq.s32.totalorder %s21, 2
    %p93 = por %p91, %p92
    %p95 = scmp.ne.s32.totalorder %s78, %s94
    %p96 = scmp.eq.s32.totalorder %s21, 0
    %p97 = por %p95, %p96
    %s98 = ssub.s32 %s22, %s41
    %s99 = ssub.s32 %s23, %s37
    %s100 = sor.u32 %s98, %s99
    %s101 = ssub.s32 %s24, %s33
    %s102 = sor.u32 %s100, %s101
    %p103 = scmp.eq.s32.totalorder %s102, 0
    %s105 = sadd.s32 %s104, 1
    %s106 = scalar_select %p103, %s104, %s105
    %p109 = pneg %p103
    %p110 = scmp.eq.s32.totalorder %s15, 2
    %p111 = por %p109, %p110
    %p112 = scmp.ne.s32.totalorder %s104, %s107
    %p113 = scmp.eq.s32.totalorder %s15, 0
    %p114 = por %p112, %p113
    %p115 = scmp.ne.s32.totalorder %s104, %s107
    %p116 = scmp.eq.s32.totalorder %s20, 2
    %p117 = por %p115, %p116
    %p118 = scmp.ne.s32.totalorder %s107, %s108
    %p119 = scmp.eq.s32.totalorder %s20, 0
    %p120 = por %p118, %p119
    %p121 = scmp.ne.s32.totalorder %s107, %s108
    %p122 = scmp.eq.s32.totalorder %s21, 2
    %p123 = por %p121, %p122
    %p125 = scmp.ne.s32.totalorder %s108, %s124
    %p126 = scmp.eq.s32.totalorder %s21, 0
    %p127 = por %p125, %p126
    %p128 = scmp.le.s32.totalorder 1, %s15
    %p129 = scmp.lt.s32.totalorder %s15, 4
    %p130 = pnand %p128, %p129
    %p131 = pneg %p130
    // Predicated region
    $region9: #{_forward_impl.3} parent=5 // pred_check
      _
    $region10: #{_forward_impl.3} parent=5 // pred_check_branch
      %133 = sbr.rel (%p130) target = $region12
    $region11: #{_forward_impl.3} parent=5 // pred_region
      %s134 = ssub.s32 %s15, 1
    $region12: #{_forward_impl.3} parent=5 // pred_fallthru
      _
    %p135 = scmp.lt.s32.totalorder %s15, 3
    // Predicated region
    $region13: #{_forward_impl.3} parent=5 // pred_check
      %p136 = pneg %p135
    $region14: #{_forward_impl.3} parent=5 // pred_check_branch
      %138 = sbr.rel (%p136) target = $region16
    $region15: #{_forward_impl.3} parent=5 // pred_region
      // Predicated region
      $region17: #{_forward_impl.3} parent=15 // pred_check
        %p139 = pneg %p56
      $region18: #{_forward_impl.3} parent=15 // pred_check_branch
        %141 = sbr.rel (%p139) target = $region20
      $region19: #{_forward_impl.3} parent=15 // pred_region
        %s142 = smul.u32 16, %s23
        %p143 = scmp.lt.s32.totalorder %s22, 2
        %s144 = scalar_select %p143, %s22, 2
        %p145 = scmp.lt.s32.totalorder %s142, 15
        %s146 = scalar_select %p145, %s142, 15
        %s147 = smul.addr %s144, 16
        %s148 = sadd.s32 %s146, %s147
        %s149 = smul.addr %s148, 4
        %s150 = scalar_lea.vmem %s1, %s149
        %s151 = smul.u32 16, %s23
      $region20: #{_forward_impl.3} parent=15 // pred_fallthru
        _
      // Predicated region
      $region21: #{_forward_impl.3} parent=15 // pred_check
        %p152 = pneg %p84
      $region22: #{_forward_impl.3} parent=15 // pred_check_branch
        %154 = sbr.rel (%p152) target = $region24
      $region23: #{_forward_impl.3} parent=15 // pred_region
        %s155 = smul.u32 16, %s24
        %p156 = scmp.lt.s32.totalorder %s22, 2
        %s157 = scalar_select %p156, %s22, 2
        %p158 = scmp.lt.s32.totalorder %s155, 15
        %s159 = scalar_select %p158, %s155, 15
        %s160 = smul.addr %s157, 16
        %s161 = sadd.s32 %s159, %s160
        %s162 = smul.addr %s161, 4
        %s163 = scalar_lea.vmem %s2, %s162
        %s164 = smul.u32 16, %s24
      $region24: #{_forward_impl.3} parent=15 // pred_fallthru
        _
    $region16: #{_forward_impl.3} parent=5 // pred_fallthru
      _
    %p165 = scmp.le.s32.totalorder 1, %s15
    %p166 = scmp.lt.s32.totalorder %s15, 4
    %p167 = pnand %p165, %p166
    %p168 = pneg %p167
    // Predicated region
    $region25: #{_forward_impl.3} parent=5 // pred_check
      _
    $region26: #{_forward_impl.3} parent=5 // pred_check_branch
      %170 = sbr.rel (%p167) target = $region28
    $region27: #{_forward_impl.3} parent=5 // pred_region
      %s171 = ssub.s32 %s15, 1
      %s172 = smul.u32 16, %s26
      %p173 = scmp.lt.s32.totalorder %s25, 2
      %s174 = scalar_select %p173, %s25, 2
      %p175 = scmp.lt.s32.totalorder %s172, 15
      %s176 = scalar_select %p175, %s172, 15
      %s177 = smul.addr %s174, 16
      %s178 = sadd.s32 %s176, %s177
      %s179 = smul.addr %s178, 4
      %s180 = scalar_lea.vmem %s1, %s179
      %p181 = pneg %p62
      %p182 = pneg %p59
      %s183 = smul.u32 16, %s27
      %p184 = scmp.lt.s32.totalorder %s25, 2
      %s185 = scalar_select %p184, %s25, 2
      %p186 = scmp.lt.s32.totalorder %s183, 15
      %s187 = scalar_select %p186, %s183, 15
      %s188 = smul.addr %s185, 16
      %s189 = sadd.s32 %s187, %s188
      %s190 = smul.addr %s189, 4
      %s191 = scalar_lea.vmem %s2, %s190
      %p192 = pneg %p90
      %p193 = pneg %p87
      %p194 = pneg %p120
      %p195 = pneg %p117
      %s196 = smul.u32 16, %s26
      %p197 = scmp.lt.s32.totalorder %s25, 2
      %s198 = scalar_select %p197, %s25, 2
      %p199 = scmp.lt.s32.totalorder %s196, 15
      %s200 = scalar_select %p199, %s196, 15
      %p201 = scmp.lt.s32.totalorder %s27, 0
      %s202 = scalar_select %p201, %s27, 0
      %s203 = sadd.s32 %s202, %s200
      %s204 = smul.addr %s198, 16
      %s205 = sadd.s32 %s203, %s204
      %s206 = smul.addr %s205, 8
      %s207 = scalar_lea.vmem %s3, %s206
      %s208 = smul.u32 16, %s26
      %p209 = scmp.lt.s32.totalorder %s25, 2
      %s210 = scalar_select %p209, %s25, 2
      %p211 = scmp.lt.s32.totalorder %s208, 15
      %s212 = scalar_select %p211, %s208, 15
      %s213 = smul.addr %s210, 16
      %s214 = sadd.s32 %s212, %s213
      %s215 = smul.addr %s214, 4
      %s216 = scalar_lea.vmem %s1, %s215
      %s217 = smul.u32 16, %s26
      %s218 = smul.u32 16, %s27
      %p219 = scmp.lt.s32.totalorder %s25, 2
      %s220 = scalar_select %p219, %s25, 2
      %p221 = scmp.lt.s32.totalorder %s218, 15
      %s222 = scalar_select %p221, %s218, 15
      %s223 = smul.addr %s220, 16
      %s224 = sadd.s32 %s222, %s223
      %s225 = smul.addr %s224, 4
      %s226 = scalar_lea.vmem %s2, %s225
      %s227 = smul.u32 16, %s27
      %s228 = smul.u32 16, %s26
      %p229 = scmp.lt.s32.totalorder %s25, 2
      %s230 = scalar_select %p229, %s25, 2
      %p231 = scmp.lt.s32.totalorder %s228, 15
      %s232 = scalar_select %p231, %s228, 15
      %p233 = scmp.lt.s32.totalorder %s27, 0
      %s234 = scalar_select %p233, %s27, 0
      %s235 = sadd.s32 %s234, %s232
      %s236 = smul.addr %s230, 16
      %s237 = sadd.s32 %s235, %s236
      %s238 = smul.addr %s237, 8
      %s239 = scalar_lea.vmem %s3, %s238
      %s240 = smul.u32 16, %s26
      %s242 = sld [smem:[#allocation3 + %s25]]
      %s243 = smul.u32 %s26, 128
      %p244 = scmp.lt.s32.totalorder %s243, %s242
      %s245 = smul.u32 %s27, 128
      %p246 = scmp.lt.s32.totalorder %s245, %s242
      %p247 = pnand %p244, %p246
      %p248 = pneg %p247
      // Predicated region
      $region29: #{_forward_impl.3} parent=27 // pred_check
        _
      $region30: #{_forward_impl.3} parent=27 // pred_check_branch
        %250 = sbr.rel (%p247) target = $region32
      $region31: #{_forward_impl.3} parent=27 // pred_region
        %v251 = vld [vmem:[%s216] sm:$0xf]
        %v252 = vld [vmem:[%s216 + $0x4] sm:$0xf]
        %v253 = vld [vmem:[%s216 + $0x8] sm:$0xf]
        %v254 = vld [vmem:[%s216 + $0xc] sm:$0xf]
        %v255 = vld [vmem:[%s216 + $0x10] sm:$0xf]
        %v256 = vld [vmem:[%s216 + $0x14] sm:$0xf]
        %v257 = vld [vmem:[%s216 + $0x18] sm:$0xf]
        %v258 = vld [vmem:[%s216 + $0x1c] sm:$0xf]
        %v259 = vld [vmem:[%s216 + $0x20] sm:$0xf]
        %v260 = vld [vmem:[%s216 + $0x24] sm:$0xf]
        %v261 = vld [vmem:[%s216 + $0x28] sm:$0xf]
        %v262 = vld [vmem:[%s216 + $0x2c] sm:$0xf]
        %v263 = vld [vmem:[%s216 + $0x30] sm:$0xf]
        %v264 = vld [vmem:[%s216 + $0x34] sm:$0xf]
        %v265 = vld [vmem:[%s216 + $0x38] sm:$0xf]
        %v266 = vld [vmem:[%s216 + $0x3c] sm:$0xf]
        %v267 = vld [vmem:[%s226] sm:$0xf]
        %v268 = vld [vmem:[%s226 + $0x4] sm:$0xf]
        %v269 = vld [vmem:[%s226 + $0x8] sm:$0xf]
        %v270 = vld [vmem:[%s226 + $0xc] sm:$0xf]
        %v271 = vld [vmem:[%s226 + $0x10] sm:$0xf]
        %v272 = vld [vmem:[%s226 + $0x14] sm:$0xf]
        %v273 = vld [vmem:[%s226 + $0x18] sm:$0xf]
        %v274 = vld [vmem:[%s226 + $0x1c] sm:$0xf]
        %v275 = vld [vmem:[%s226 + $0x20] sm:$0xf]
        %v276 = vld [vmem:[%s226 + $0x24] sm:$0xf]
        %v277 = vld [vmem:[%s226 + $0x28] sm:$0xf]
        %v278 = vld [vmem:[%s226 + $0x2c] sm:$0xf]
        %v279 = vld [vmem:[%s226 + $0x30] sm:$0xf]
        %v280 = vld [vmem:[%s226 + $0x34] sm:$0xf]
        %v281 = vld [vmem:[%s226 + $0x38] sm:$0xf]
        %v282 = vld [vmem:[%s226 + $0x3c] sm:$0xf]
        %v299 = vunpack.c.l.b16 %v251
        %v300 = vunpack.c.l.b16 %v252
        %v301 = vunpack.c.l.b16 %v253
        %v302 = vunpack.c.l.b16 %v254
        %v303 = vunpack.c.l.b16 %v255
        %v304 = vunpack.c.l.b16 %v256
        %v305 = vunpack.c.l.b16 %v257
        %v306 = vunpack.c.l.b16 %v258
        %v307 = vunpack.c.l.b16 %v259
        %v308 = vunpack.c.l.b16 %v260
        %v309 = vunpack.c.l.b16 %v261
        %v310 = vunpack.c.l.b16 %v262
        %v311 = vunpack.c.l.b16 %v263
        %v312 = vunpack.c.l.b16 %v264
        %v313 = vunpack.c.l.b16 %v265
        %v314 = vunpack.c.l.b16 %v266
        %v315 = vpack.c.b16 %v300, %v299
        %v316 = vpack.c.b16 %v302, %v301
        %v317 = vpack.c.b16 %v304, %v303
        %v318 = vpack.c.b16 %v306, %v305
        %v319 = vpack.c.b16 %v308, %v307
        %v320 = vpack.c.b16 %v310, %v309
        %v321 = vpack.c.b16 %v312, %v311
        %v322 = vpack.c.b16 %v314, %v313
        %v347 = vunpack.c.l.b16 %v267
        %v348 = vunpack.c.l.b16 %v268
        %v349 = vunpack.c.l.b16 %v269
        %v350 = vunpack.c.l.b16 %v270
        %v351 = vunpack.c.l.b16 %v271
        %v352 = vunpack.c.l.b16 %v272
        %v353 = vunpack.c.l.b16 %v273
        %v354 = vunpack.c.l.b16 %v274
        %v355 = vunpack.c.l.b16 %v275
        %v356 = vunpack.c.l.b16 %v276
        %v357 = vunpack.c.l.b16 %v277
        %v358 = vunpack.c.l.b16 %v278
        %v359 = vunpack.c.l.b16 %v279
        %v360 = vunpack.c.l.b16 %v280
        %v361 = vunpack.c.l.b16 %v281
        %v362 = vunpack.c.l.b16 %v282
        %v363 = vpack.c.b16 %v348, %v347
        %v364 = vpack.c.b16 %v350, %v349
        %v365 = vpack.c.b16 %v352, %v351
        %v366 = vpack.c.b16 %v354, %v353
        %v367 = vpack.c.b16 %v356, %v355
        %v368 = vpack.c.b16 %v358, %v357
        %v369 = vpack.c.b16 %v360, %v359
        %v370 = vpack.c.b16 %v362, %v361
        %379 = vmatprep.subr.bf16.mxu0 0
        %380 = vmatpush1.bf16.xpose.msra.mxu0 %v363
        %381 = vmatprep.subr.bf16.mxu0 0
        %382 = vmatpush1.bf16.xpose.msra.mxu0 %v364
        %383 = vmatprep.subr.bf16.mxu0 0
        %384 = vmatpush1.bf16.xpose.msra.mxu0 %v365
        %385 = vmatprep.subr.bf16.mxu0 0
        %386 = vmatpush1.bf16.xpose.msra.mxu0 %v366
        %387 = vmatprep.subr.bf16.mxu0 0
        %388 = vmatpush1.bf16.xpose.msra.mxu0 %v367
        %389 = vmatprep.subr.bf16.mxu0 0
        %390 = vmatpush1.bf16.xpose.msra.mxu0 %v368
        %391 = vmatprep.subr.bf16.mxu0 0
        %392 = vmatpush1.bf16.xpose.msra.mxu0 %v369
        %393 = vmatprep.subr.bf16.mxu0 0
        %394 = vmatpush1.bf16.xpose.msra.mxu0 %v370
        %395 = vmatprep.subr.bf16.mxu0 0
        %396 = vmatpush1.bf16.xpose.msra.mxu0 0
        %397 = vmatprep.subr.bf16.mxu0 0
        %398 = vmatpush1.bf16.xpose.msra.mxu0 0
        %399 = vmatprep.subr.bf16.mxu0 0
        %400 = vmatpush1.bf16.xpose.msra.mxu0 0
        %401 = vmatprep.subr.bf16.mxu0 0
        %402 = vmatpush1.bf16.xpose.msra.mxu0 0
        %403 = vmatprep.subr.bf16.mxu0 0
        %404 = vmatpush1.bf16.xpose.msra.mxu0 0
        %405 = vmatprep.subr.bf16.mxu0 0
        %406 = vmatpush1.bf16.xpose.msra.mxu0 0
        %407 = vmatprep.subr.bf16.mxu0 0
        %408 = vmatpush1.bf16.xpose.msra.mxu0 0
        %409 = vmatprep.subr.bf16.mxu0 0
        %410 = vmatpush1.bf16.xpose.msra.mxu0 0
        %411 = vmatprep.mubr.bf16.mxu0 0
        %412 = vmatmul.mubr.bf16.gmra.mrb[0].mxu0 %v315
        %v413 = vpop.f32.mrb[0].mxu0
        %v414 = vadd.f32 0.0, %v413
        %v415 = vpop.f32.mrb[0].mxu0
        %v416 = vpop.f32.mrb[0].mxu0
        %v417 = vadd.f32 0.0, %v416
        %v418 = vpop.f32.mrb[0].mxu0
        %419 = vmatprep.mubr.bf16.mxu0 0
        %420 = vmatmul.mubr.bf16.gmra.mrb[0].mxu0 %v316
        %v421 = vpop.f32.mrb[0].mxu0
        %v422 = vadd.f32 0.0, %v421
        %v423 = vpop.f32.mrb[0].mxu0
        %v424 = vpop.f32.mrb[0].mxu0
        %v425 = vadd.f32 0.0, %v424
        %v426 = vpop.f32.mrb[0].mxu0
        %427 = vmatprep.mubr.bf16.mxu0 0
        %428 = vmatmul.mubr.bf16.gmra.mrb[0].mxu0 %v317
        %v429 = vpop.f32.mrb[0].mxu0
        %v430 = vadd.f32 0.0, %v429
        %v431 = vpop.f32.mrb[0].mxu0
        %v432 = vpop.f32.mrb[0].mxu0
        %v433 = vadd.f32 0.0, %v432
        %v434 = vpop.f32.mrb[0].mxu0
        %435 = vmatprep.mubr.bf16.mxu0 0
        %436 = vmatmul.mubr.bf16.gmra.mrb[0].mxu0 %v318
        %v437 = vpop.f32.mrb[0].mxu0
        %v438 = vadd.f32 0.0, %v437
        %v439 = vpop.f32.mrb[0].mxu0
        %v440 = vpop.f32.mrb[0].mxu0
        %v441 = vadd.f32 0.0, %v440
        %v442 = vpop.f32.mrb[0].mxu0
        %443 = vmatprep.mubr.bf16.mxu0 0
        %444 = vmatmul.mubr.bf16.gmra.mrb[0].mxu0 %v319
        %v445 = vpop.f32.mrb[0].mxu0
        %v446 = vadd.f32 0.0, %v445
        %v447 = vpop.f32.mrb[0].mxu0
        %v448 = vpop.f32.mrb[0].mxu0
        %v449 = vadd.f32 0.0, %v448
        %v450 = vpop.f32.mrb[0].mxu0
        %451 = vmatprep.mubr.bf16.mxu0 0
        %452 = vmatmul.mubr.bf16.gmra.mrb[0].mxu0 %v320
        %v453 = vpop.f32.mrb[0].mxu0
        %v454 = vadd.f32 0.0, %v453
        %v455 = vpop.f32.mrb[0].mxu0
        %v456 = vpop.f32.mrb[0].mxu0
        %v457 = vadd.f32 0.0, %v456
        %v458 = vpop.f32.mrb[0].mxu0
        %459 = vmatprep.mubr.bf16.mxu0 0
        %460 = vmatmul.mubr.bf16.gmra.mrb[0].mxu0 %v321
        %v461 = vpop.f32.mrb[0].mxu0
        %v462 = vadd.f32 0.0, %v461
        %v463 = vpop.f32.mrb[0].mxu0
        %v464 = vpop.f32.mrb[0].mxu0
        %v465 = vadd.f32 0.0, %v464
        %v466 = vpop.f32.mrb[0].mxu0
        %467 = vmatprep.mubr.bf16.mxu0 0
        %468 = vmatmul.mubr.bf16.gmra.mrb[0].mxu0 %v322
        %v469 = vpop.f32.mrb[0].mxu0
        %v470 = vadd.f32 0.0, %v469
        %v471 = vpop.f32.mrb[0].mxu0
        %v472 = vpop.f32.mrb[0].mxu0
        %v473 = vadd.f32 0.0, %v472
        %v474 = vpop.f32.mrb[0].mxu0
        %475 = vdwg.mxu0
        %v476 = vmul.f32 %v414, 0.5
        %v477 = vmul.f32 %v417, 0.5
        %v478 = vmul.f32 %v422, 0.5
        %v479 = vmul.f32 %v425, 0.5
        %v480 = vmul.f32 %v430, 0.5
        %v481 = vmul.f32 %v433, 0.5
        %v482 = vmul.f32 %v438, 0.5
        %v483 = vmul.f32 %v441, 0.5
        %v484 = vmul.f32 %v446, 0.5
        %v485 = vmul.f32 %v449, 0.5
        %v486 = vmul.f32 %v454, 0.5
        %v487 = vmul.f32 %v457, 0.5
        %v488 = vmul.f32 %v462, 0.5
        %v489 = vmul.f32 %v465, 0.5
        %v490 = vmul.f32 %v470, 0.5
        %v491 = vmul.f32 %v473, 0.5
        %v492 = vtanh.pop %v476
        %v493 = vtanh.pop %v477
        %v494 = vtanh.pop %v478
        %v495 = vtanh.pop %v479
        %v496 = vtanh.pop %v480
        %v497 = vtanh.pop %v481
        %v498 = vtanh.pop %v482
        %v499 = vtanh.pop %v483
        %v500 = vtanh.pop %v484
        %v501 = vtanh.pop %v485
        %v502 = vtanh.pop %v486
        %v503 = vtanh.pop %v487
        %v504 = vtanh.pop %v488
        %v505 = vtanh.pop %v489
        %v506 = vtanh.pop %v490
        %v507 = vtanh.pop %v491
        %v508 = vmul.f32 %v492, 0.5
        %v509 = vmul.f32 %v493, 0.5
        %v510 = vmul.f32 %v494, 0.5
        %v511 = vmul.f32 %v495, 0.5
        %v512 = vmul.f32 %v496, 0.5
        %v513 = vmul.f32 %v497, 0.5
        %v514 = vmul.f32 %v498, 0.5
        %v515 = vmul.f32 %v499, 0.5
        %v516 = vmul.f32 %v500, 0.5
        %v517 = vmul.f32 %v501, 0.5
        %v518 = vmul.f32 %v502, 0.5
        %v519 = vmul.f32 %v503, 0.5
        %v520 = vmul.f32 %v504, 0.5
        %v521 = vmul.f32 %v505, 0.5
        %v522 = vmul.f32 %v506, 0.5
        %v523 = vmul.f32 %v507, 0.5
        %v524 = vadd.f32 %v508, 0.5
        %v525 = vadd.f32 %v509, 0.5
        %v526 = vadd.f32 %v510, 0.5
        %v527 = vadd.f32 %v511, 0.5
        %v528 = vadd.f32 %v512, 0.5
        %v529 = vadd.f32 %v513, 0.5
        %v530 = vadd.f32 %v514, 0.5
        %v531 = vadd.f32 %v515, 0.5
        %v532 = vadd.f32 %v516, 0.5
        %v533 = vadd.f32 %v517, 0.5
        %v534 = vadd.f32 %v518, 0.5
        %v535 = vadd.f32 %v519, 0.5
        %v536 = vadd.f32 %v520, 0.5
        %v537 = vadd.f32 %v521, 0.5
        %v538 = vadd.f32 %v522, 0.5
        %v539 = vadd.f32 %v523, 0.5
        %540 = vst [vmem:[%s239] sm:$0xff] %v524
        %541 = vst [vmem:[%s239 + $0x8] sm:$0xff] %v525
        %542 = vst [vmem:[%s239 + $0x10] sm:$0xff] %v526
        %543 = vst [vmem:[%s239 + $0x18] sm:$0xff] %v527
        %544 = vst [vmem:[%s239 + $0x20] sm:$0xff] %v528
        %545 = vst [vmem:[%s239 + $0x28] sm:$0xff] %v529
        %546 = vst [vmem:[%s239 + $0x30] sm:$0xff] %v530
        %547 = vst [vmem:[%s239 + $0x38] sm:$0xff] %v531
        %548 = vst [vmem:[%s239 + $0x40] sm:$0xff] %v532
        %549 = vst [vmem:[%s239 + $0x48] sm:$0xff] %v533
        %550 = vst [vmem:[%s239 + $0x50] sm:$0xff] %v534
        %551 = vst [vmem:[%s239 + $0x58] sm:$0xff] %v535
        %552 = vst [vmem:[%s239 + $0x60] sm:$0xff] %v536
        %553 = vst [vmem:[%s239 + $0x68] sm:$0xff] %v537
        %554 = vst [vmem:[%s239 + $0x70] sm:$0xff] %v538
        %555 = vst [vmem:[%s239 + $0x78] sm:$0xff] %v539
      $region32: #{_forward_impl.3} parent=27 // pred_fallthru
        _
      %s556 = smul.u32 16, %s26
      %p557 = scmp.lt.s32.totalorder %s25, 2
      %s558 = scalar_select %p557, %s25, 2
      %p559 = scmp.lt.s32.totalorder %s556, 15
      %s560 = scalar_select %p559, %s556, 15
      %p561 = scmp.lt.s32.totalorder %s27, 0
      %s562 = scalar_select %p561, %s27, 0
      %s563 = sadd.s32 %s562, %s560
      %s564 = smul.addr %s558, 16
      %s565 = sadd.s32 %s563, %s564
      %s566 = smul.addr %s565, 8
      %s567 = scalar_lea.vmem %s3, %s566
      // Predicated region
      $region33: #{_forward_impl.3} parent=27 // pred_check
        %p568 = pneg %p117
      $region34: #{_forward_impl.3} parent=27 // pred_check_branch
        %570 = sbr.rel (%p568) target = $region36
      $region35: #{_forward_impl.3} parent=27 // pred_region
        %s571 = smul.u32 16, %s26
      $region36: #{_forward_impl.3} parent=27 // pred_fallthru
        _
    $region28: #{_forward_impl.3} parent=5 // pred_fallthru
      _
    %p572 = scmp.le.s32.totalorder 2, %s15
    // Predicated region
    $region37: #{_forward_impl.3} parent=5 // pred_check
      %p573 = pneg %p572
    $region38: #{_forward_impl.3} parent=5 // pred_check_branch
      %575 = sbr.rel (%p573) target = $region40
    $region39: #{_forward_impl.3} parent=5 // pred_region
      %s576 = ssub.s32 %s15, 2
      // Predicated region
      $region41: #{_forward_impl.3} parent=39 // pred_check
        %p577 = pneg %p123
      $region42: #{_forward_impl.3} parent=39 // pred_check_branch
        %579 = sbr.rel (%p577) target = $region44
      $region43: #{_forward_impl.3} parent=39 // pred_region
        %s580 = smul.u32 16, %s29
        %p581 = scmp.lt.s32.totalorder %s28, 2
        %s582 = scalar_select %p581, %s28, 2
        %p583 = scmp.lt.s32.totalorder %s580, 15
        %s584 = scalar_select %p583, %s580, 15
        %p585 = scmp.lt.s32.totalorder %s30, 0
        %s586 = scalar_select %p585, %s30, 0
        %s587 = sadd.s32 %s586, %s584
        %s588 = smul.addr %s582, 16
        %s589 = sadd.s32 %s587, %s588
        %s590 = smul.addr %s589, 8
        %s591 = scalar_lea.vmem %s3, %s590
      $region44: #{_forward_impl.3} parent=39 // pred_fallthru
        _
    $region40: #{_forward_impl.3} parent=5 // pred_fallthru
      _
  $region6: #{_forward_impl.3} parent=0 // loop_footer
    %s19 = sadd.s32 1, %s15
  $region7: #{_forward_impl.3} parent=0 // loop_footer_branch
    %14 = sbr.rel target = $region3
  $region8: #{_forward_impl.3} parent=0 // loop_exit
    _

</llo_original>
